<compile_context>
chip_gen: v5e
topology: v5e:2x2
jax: 0.10.0
libtpu: 0.0.40
codegen_flags: <defaults>
</compile_context>

<pallas_src>
import functools
import math

import jax
import jax.numpy as jnp
from jax.experimental import pallas as pl
from jax.experimental.pallas import tpu as pltpu

_PI = math.pi
_PI_2 = math.pi / 2.0
_PI_4 = math.pi / 4.0
_TAN_PI_8 = 0.41421356237309503  # tan(pi/8) = sqrt(2) - 1


def _atan_0_1(t):
    """arctan(t) for t in [0, 1] (Cephes atanf core), basic VPU ops only."""
    big = t > _TAN_PI_8
    z = jnp.where(big, (t - 1.0) / (t + 1.0), t)   # reduced arg, |z| <= tan(pi/8)
    zz = z * z
    p = ((((8.05374449538e-2 * zz - 1.38776856032e-1) * zz
           + 1.99777106478e-1) * zz - 3.33329491539e-1) * zz) * z + z
    return jnp.where(big, p + _PI_4, p)


def _atan2(y, x):
    """atan2(y, x) from mul/add/abs/select + EUP approx reciprocal (+1 Newton step)."""
    ax = jnp.abs(x)
    ay = jnp.abs(y)
    hi = jnp.maximum(ax, ay)
    lo = jnp.minimum(ax, ay)
    hi_safe = jnp.where(hi > 0.0, hi, 1.0)
    r0 = pl.reciprocal(hi_safe, approx=True)       # EUP slot (otherwise idle)
    r1 = r0 * (2.0 - hi_safe * r0)                 # one Newton step -> ~f32 accuracy
    t = lo * r1                                    # in [0, 1]; 0 when x == y == 0
    r = _atan_0_1(t)
    r = jnp.where(ay > ax, _PI_2 - r, r)           # angle of (|x|, |y|)
    r = jnp.where(x < 0.0, _PI - r, r)             # reflect into left half-plane
    return jnp.where(y < 0.0, -r, r)               # reflect into lower half-plane


def _spin_shader_kernel(n_ref, q_ref, cm_ref, klass_ref, out_ref, *,
                        scale, bias, n_colours, c_out):
    # n_ref:     (3, R, 128)  surface normal components, rays on sublanes+lanes
    # q_ref:     (4, R, 128)  camera-orientation-conjugate quaternion (w, x, y, z)
    # cm_ref:    (2C, Npad)   bf16 hi/lo split colourmap (resident)
    # klass_ref: (Npad, T)    int32 row-index plane (resident, T = R*128)
    # out_ref:   (C, T)
    n1 = n_ref[0]
    n2 = n_ref[1]
    n3 = n_ref[2]
    qw = q_ref[0]
    qx = q_ref[1]
    qy = q_ref[2]
    qz = q_ref[3]

    # Hamilton product (0, n1, n2, n3) * (qw, qx, qy, qz)  -- all (R, 128) vreg-dense
    a = -(n1 * qx + n2 * qy + n3 * qz)
    b = n1 * qw + n2 * qz - n3 * qy
    c = n2 * qw + n3 * qx - n1 * qz
    d = n3 * qw + n1 * qy - n2 * qx

    s2 = b * b + c * c + d * d
    real = a * a - s2
    imag = 2.0 * a * jnp.sqrt(s2)
    modulus = jnp.sqrt(real * real + imag * imag)

    # idx = floor(atan2*scale + bias) wrapped into [0, N)
    idx_f = jnp.floor(_atan2(imag, real) * scale + bias)
    if (n_colours & (n_colours - 1)) == 0:
        idx = jnp.bitwise_and(idx_f.astype(jnp.int32), n_colours - 1)
    else:
        w = idx_f - n_colours * jnp.floor(idx_f * (1.0 / n_colours))
        w = jnp.clip(w, 0.0, float(n_colours - 1))
        idx = w.astype(jnp.int32)

    # Flatten rays onto lanes only for the gather (lane-dense (1, T) rows).
    r_blk, l_blk = idx.shape
    t = r_blk * l_blk
    idx_row = idx.reshape(1, t)
    mod_row = modulus.reshape(1, t)

    # Colourmap gather as cmap_split @ one-hot(idx) on the MXU (no TPU gather prim).
    onehot = (klass_ref[...] == idx_row).astype(jnp.bfloat16)                 # (Npad, T)
    part = jnp.dot(cm_ref[...], onehot, preferred_element_type=jnp.float32)   # (2C, T)
    colour = part[0:c_out, :] + part[c_out:2 * c_out, :]                      # hi + lo

    out_ref[...] = colour * mod_row


def spin_shader(camera_orientation_conj, surface_normals, cyclic_colourmap,
                degree=1, *, max_tile=4096):
    """Pallas TPU implementation of SpinShader.forward."""
    q = jnp.asarray(camera_orientation_conj, jnp.float32)
    n = jnp.asarray(surface_normals, jnp.float32)
    cmap = jnp.asarray(cyclic_colourmap, jnp.float32)
    assert n.shape[-1] == 3 and q.shape[-1] == 4 and cmap.ndim == 2
    assert max_tile % 1024 == 0

    batch_shape = jnp.broadcast_shapes(n.shape[:-1], q.shape[:-1])
    n = jnp.broadcast_to(n, batch_shape + (3,))
    q = jnp.broadcast_to(q, batch_shape + (4,))
    m = int(math.prod(batch_shape)) if batch_shape else 1

    n_colours, c_out = cmap.shape

    # ---- tile selection --------------------------------------------------------
    # tile % 128 == 0 always (sublane/lane split); tile % 1024 == 0 when grid > 1 so
    # the (tile//128, 128) block obeys the (8,128) rule; and cap tile so mid-sized
    # problems still get >= 2 grid steps (both v7x TensorCores busy).
    if m <= 1024:
        tile = pl.cdiv(m, 128) * 128
    else:
        chunks = pl.cdiv(m, 1024)
        tile = min(max_tile, 1024 * max(1, chunks // 2))
    m_pad = pl.cdiv(m, tile) * tile
    grid = (m_pad // tile,)
    r = tile // 128

    # ---- SoA, sublane+lane dense slabs ------------------------------------------
    # TODO(synk): accept/produce component-major slabs upstream to drop these
    # wrapper-side transposes (each is a separate XLA HBM pass).
    n_flat = n.reshape(m, 3)
    q_flat = q.reshape(m, 4)
    if m_pad != m:
        n_flat = jnp.pad(n_flat, ((0, m_pad - m), (0, 0)))
        q_flat = jnp.pad(q_flat, ((0, m_pad - m), (0, 0)))
    n_cm = n_flat.T.reshape(3, m_pad // 128, 128)
    q_cm = q_flat.T.reshape(4, m_pad // 128, 128)

    # ---- bf16 hi/lo split of the colourmap (MXU-native, ~f32 accuracy) ----------
    n_pad_col = pl.cdiv(n_colours, 128) * 128
    cm_t = cmap.T                                                   # (C, N)
    cm_hi = cm_t.astype(jnp.bfloat16)
    cm_lo = (cm_t - cm_hi.astype(jnp.float32)).astype(jnp.bfloat16)
    cm_split = jnp.concatenate([cm_hi, cm_lo], axis=0)              # (2C, N)
    if n_pad_col != n_colours:
        cm_split = jnp.pad(cm_split, ((0, 0), (0, n_pad_col - n_colours)))

    # ---- resident class-index plane (built once on host, DMA'd once per core) ---
    klass = jax.lax.broadcasted_iota(jnp.int32, (n_pad_col, tile), 0)
    # rows >= n_colours never match any idx in [0, n_colours) -> contribute zero.

    scale = float(degree) * n_colours / math.tau
    bias = 0.5 * float(degree) * n_colours

    kernel = functools.partial(_spin_shader_kernel, scale=scale, bias=bias,
                               n_colours=n_colours, c_out=c_out)

    out = pl.pallas_call(
        kernel,
        out_shape=jax.ShapeDtypeStruct((c_out, m_pad), jnp.float32),
        grid_spec=pltpu.PrefetchScalarGridSpec(
            num_scalar_prefetch=0,
            grid=grid,
            in_specs=[
                pl.BlockSpec((3, r, 128), lambda i: (0, i, 0)),
                pl.BlockSpec((4, r, 128), lambda i: (0, i, 0)),
                pl.BlockSpec((2 * c_out, n_pad_col), lambda i: (0, 0)),  # resident
                pl.BlockSpec((n_pad_col, tile), lambda i: (0, 0)),        # resident
            ],
            out_specs=pl.BlockSpec((c_out, tile), lambda i: (0, i)),
        ),
        compiler_params=pltpu.CompilerParams(
            dimension_semantics=("parallel",),
            vmem_limit_bytes=48 * 1024 * 1024,
        ),
    )(n_cm, q_cm, cm_split, klass)

    return out[:, :m].T.reshape(batch_shape + (c_out,))


def _reference(camera_orientation_conj, surface_normals, cyclic_colourmap, degree=1):
    """Pure-JAX mirror of the PyTorch SpinShader.forward."""
    n = surface_normals.astype(jnp.float32)
    q2 = camera_orientation_conj.astype(jnp.float32)
    p = jnp.concatenate([jnp.zeros(n.shape[:-1] + (1,), n.dtype), n], axis=-1)
    p, q2 = jnp.broadcast_arrays(p, q2)
    a1, b1, c1, d1 = p[..., 0], p[..., 1], p[..., 2], p[..., 3]
    a2, b2, c2, d2 = q2[..., 0], q2[..., 1], q2[..., 2], q2[..., 3]
    a = a1 * a2 - b1 * b2 - c1 * c2 - d1 * d2
    b = a1 * b2 + b1 * a2 + c1 * d2 - d1 * c2
    c = a1 * c2 - b1 * d2 + c1 * a2 + d1 * b2
    d = a1 * d2 + b1 * c2 - c1 * b2 + d1 * a2
    bcd_sq = b * b + c * c + d * d
    real = a * a - bcd_sq
    imag = jnp.sqrt(bcd_sq) * a * 2.0
    n_col = cyclic_colourmap.shape[0]
    idx = jnp.floor(((jnp.arctan2(imag, real) / math.tau + 0.5) * degree) * n_col)
    idx = jnp.mod(idx.astype(jnp.int32), n_col)
    colour = cyclic_colourmap[idx, :]
    return colour * jnp.sqrt(real * real + imag * imag)[..., None]


def _check_rays(out, ref, max_bad_frac):
    # A ray can only disagree if its discrete colourmap bin flips at a floor()
    # boundary (in-kernel atan2 vs XLA atan2 differ by ~1 ulp); tolerate a tiny
    # fraction of rays.
    err = jnp.abs(out - ref)
    tol = 1e-4 + 1e-4 * jnp.abs(ref)
    ray_ok = jnp.all(err <= tol, axis=-1)
    frac_bad = 1.0 - float(jnp.mean(ray_ok.astype(jnp.float32)))
    assert frac_bad <= max_bad_frac, f"too many mismatching rays: {frac_bad:.4f}"


if __name__ == "__main__":
    key = jax.random.PRNGKey(0)
    k1, k2, k3, k4 = jax.random.split(key, 4)

    batch, h, w = 2, 16, 16
    n_colours = 256

    surface_normals = jax.random.normal(k1, (batch, h, w, 3), jnp.float32)
    surface_normals = surface_normals / jnp.linalg.norm(
        surface_normals, axis=-1, keepdims=True)

    camera_orientation_conj = jax.random.normal(k2, (batch, 1, 1, 4), jnp.float32)
    camera_orientation_conj = camera_orientation_conj / jnp.linalg.norm(
        camera_orientation_conj, axis=-1, keepdims=True)

    cyclic_colourmap = jax.random.uniform(k3, (n_colours, 3), jnp.float32)

    out = spin_shader(camera_orientation_conj, surface_normals, cyclic_colourmap,
                      degree=1)
    out = jax.block_until_ready(out)
    assert out.shape == (batch, h, w, 3), out.shape
    ref = _reference(camera_orientation_conj, surface_normals, cyclic_colourmap,
                     degree=1)
    _check_rays(out, ref, 0.01)

    # Exercise the non-power-of-two colourmap (float-wrap modulo) path.
    cmap2 = jax.random.uniform(k4, (100, 3), jnp.float32)
    out2 = spin_shader(camera_orientation_conj, surface_normals, cmap2, degree=1)
    out2 = jax.block_until_ready(out2)
    assert out2.shape == (batch, h, w, 3), out2.shape
    assert bool(jnp.all(jnp.isfinite(out2)))
    ref2 = _reference(camera_orientation_conj, surface_normals, cmap2, degree=1)
    _check_rays(out2, ref2, 0.02)

    print("KERNEL_OK")
</pallas_src>

<mosaic_0001>
module attributes {stable_mosaic.version = 11 : i64} {
  func.func @_spin_shader_kernel(%arg0: i32, %arg1: memref<3x4x128xf32, #tpu.memory_space<vmem>>, %arg2: memref<4x4x128xf32, #tpu.memory_space<vmem>>, %arg3: memref<6x256xbf16, #tpu.memory_space<vmem>>, %arg4: memref<256x512xi32, #tpu.memory_space<vmem>>, %arg5: memref<3x512xf32, #tpu.memory_space<vmem>>) attributes {dimension_semantics = [#tpu.dimension_semantics<parallel>], iteration_bounds = array<i64: 1>, scalar_prefetch = 0 : i64, scratch_operands = 0 : i64, tpu.core_type = #tpu.core_type<tc>, window_params = [{transform_indices = @transform_0, window_bounds = array<i64: 3, 4, 128>}, {transform_indices = @transform_1, window_bounds = array<i64: 4, 4, 128>}, {pipeline_mode = #tpu.pipeline_mode<synchronous>, transform_indices = @transform_2, window_bounds = array<i64: 6, 256>}, {pipeline_mode = #tpu.pipeline_mode<synchronous>, transform_indices = @transform_3, window_bounds = array<i64: 256, 512>}, {transform_indices = @transform_4, window_bounds = array<i64: 3, 512>}]} {
    %c0 = arith.constant 0 : index
    %c0_0 = arith.constant 0 : index
    %c0_1 = arith.constant 0 : index
    %0 = vector.load %arg1[%c0, %c0_0, %c0_1] : memref<3x4x128xf32, #tpu.memory_space<vmem>>, vector<1x4x128xf32>
    %1 = vector.shape_cast %0 : vector<1x4x128xf32> to vector<4x128xf32>
    %c1 = arith.constant 1 : index
    %c0_2 = arith.constant 0 : index
    %c0_3 = arith.constant 0 : index
    %2 = vector.load %arg1[%c1, %c0_2, %c0_3] : memref<3x4x128xf32, #tpu.memory_space<vmem>>, vector<1x4x128xf32>
    %3 = vector.shape_cast %2 : vector<1x4x128xf32> to vector<4x128xf32>
    %c2 = arith.constant 2 : index
    %c0_4 = arith.constant 0 : index
    %c0_5 = arith.constant 0 : index
    %4 = vector.load %arg1[%c2, %c0_4, %c0_5] : memref<3x4x128xf32, #tpu.memory_space<vmem>>, vector<1x4x128xf32>
    %5 = vector.shape_cast %4 : vector<1x4x128xf32> to vector<4x128xf32>
    %c0_6 = arith.constant 0 : index
    %c0_7 = arith.constant 0 : index
    %c0_8 = arith.constant 0 : index
    %6 = vector.load %arg2[%c0_6, %c0_7, %c0_8] : memref<4x4x128xf32, #tpu.memory_space<vmem>>, vector<1x4x128xf32>
    %7 = vector.shape_cast %6 : vector<1x4x128xf32> to vector<4x128xf32>
    %c1_9 = arith.constant 1 : index
    %c0_10 = arith.constant 0 : index
    %c0_11 = arith.constant 0 : index
    %8 = vector.load %arg2[%c1_9, %c0_10, %c0_11] : memref<4x4x128xf32, #tpu.memory_space<vmem>>, vector<1x4x128xf32>
    %9 = vector.shape_cast %8 : vector<1x4x128xf32> to vector<4x128xf32>
    %c2_12 = arith.constant 2 : index
    %c0_13 = arith.constant 0 : index
    %c0_14 = arith.constant 0 : index
    %10 = vector.load %arg2[%c2_12, %c0_13, %c0_14] : memref<4x4x128xf32, #tpu.memory_space<vmem>>, vector<1x4x128xf32>
    %11 = vector.shape_cast %10 : vector<1x4x128xf32> to vector<4x128xf32>
    %c3 = arith.constant 3 : index
    %c0_15 = arith.constant 0 : index
    %c0_16 = arith.constant 0 : index
    %12 = vector.load %arg2[%c3, %c0_15, %c0_16] : memref<4x4x128xf32, #tpu.memory_space<vmem>>, vector<1x4x128xf32>
    %13 = vector.shape_cast %12 : vector<1x4x128xf32> to vector<4x128xf32>
    %14 = arith.mulf %1, %9 : vector<4x128xf32>
    %15 = arith.mulf %3, %11 : vector<4x128xf32>
    %16 = arith.addf %14, %15 : vector<4x128xf32>
    %17 = arith.mulf %5, %13 : vector<4x128xf32>
    %18 = arith.addf %16, %17 : vector<4x128xf32>
    %cst = arith.constant 0.000000e+00 : f32
    %19 = vector.broadcast %cst : f32 to vector<4x128xf32>
    %20 = arith.subf %19, %18 : vector<4x128xf32>
    %21 = arith.mulf %1, %7 : vector<4x128xf32>
    %22 = arith.mulf %3, %13 : vector<4x128xf32>
    %23 = arith.addf %21, %22 : vector<4x128xf32>
    %24 = arith.mulf %5, %11 : vector<4x128xf32>
    %25 = arith.subf %23, %24 : vector<4x128xf32>
    %26 = arith.mulf %3, %7 : vector<4x128xf32>
    %27 = arith.mulf %5, %9 : vector<4x128xf32>
    %28 = arith.addf %26, %27 : vector<4x128xf32>
    %29 = arith.mulf %1, %13 : vector<4x128xf32>
    %30 = arith.subf %28, %29 : vector<4x128xf32>
    %31 = arith.mulf %5, %7 : vector<4x128xf32>
    %32 = arith.mulf %1, %11 : vector<4x128xf32>
    %33 = arith.addf %31, %32 : vector<4x128xf32>
    %34 = arith.mulf %3, %9 : vector<4x128xf32>
    %35 = arith.subf %33, %34 : vector<4x128xf32>
    %36 = arith.mulf %25, %25 : vector<4x128xf32>
    %37 = arith.mulf %30, %30 : vector<4x128xf32>
    %38 = arith.addf %36, %37 : vector<4x128xf32>
    %39 = arith.mulf %35, %35 : vector<4x128xf32>
    %40 = arith.addf %38, %39 : vector<4x128xf32>
    %41 = arith.mulf %20, %20 : vector<4x128xf32>
    %42 = arith.subf %41, %40 : vector<4x128xf32>
    %cst_17 = arith.constant 2.000000e+00 : f32
    %43 = vector.broadcast %cst_17 : f32 to vector<4x128xf32>
    %44 = arith.mulf %43, %20 : vector<4x128xf32>
    %45 = math.sqrt %40 : vector<4x128xf32>
    %46 = arith.mulf %44, %45 : vector<4x128xf32>
    %47 = arith.mulf %42, %42 : vector<4x128xf32>
    %48 = arith.mulf %46, %46 : vector<4x128xf32>
    %49 = arith.addf %47, %48 : vector<4x128xf32>
    %50 = math.sqrt %49 : vector<4x128xf32>
    %51 = math.absf %42 : vector<4x128xf32>
    %52 = math.absf %46 : vector<4x128xf32>
    %53 = arith.maximumf %51, %52 : vector<4x128xf32>
    %54 = arith.minimumf %51, %52 : vector<4x128xf32>
    %cst_18 = arith.constant 0.000000e+00 : f32
    %55 = vector.broadcast %cst_18 : f32 to vector<4x128xf32>
    %56 = arith.cmpf ogt, %53, %55 : vector<4x128xf32>
    %cst_19 = arith.constant 1.000000e+00 : f32
    %57 = vector.broadcast %cst_19 : f32 to vector<4x128xf32>
    %58 = arith.select %56, %53, %57 : vector<4x128xi1>, vector<4x128xf32>
    %59 = tpu.reciprocal %58 {approx = true} : vector<4x128xf32> -> vector<4x128xf32>
    %60 = arith.mulf %58, %59 : vector<4x128xf32>
    %cst_20 = arith.constant 2.000000e+00 : f32
    %61 = vector.broadcast %cst_20 : f32 to vector<4x128xf32>
    %62 = arith.subf %61, %60 : vector<4x128xf32>
    %63 = arith.mulf %59, %62 : vector<4x128xf32>
    %64 = arith.mulf %54, %63 : vector<4x128xf32>
    %cst_21 = arith.constant 0.414213568 : f32
    %65 = vector.broadcast %cst_21 : f32 to vector<4x128xf32>
    %66 = arith.cmpf ogt, %64, %65 : vector<4x128xf32>
    %cst_22 = arith.constant 1.000000e+00 : f32
    %67 = vector.broadcast %cst_22 : f32 to vector<4x128xf32>
    %68 = arith.subf %64, %67 : vector<4x128xf32>
    %cst_23 = arith.constant 1.000000e+00 : f32
    %69 = vector.broadcast %cst_23 : f32 to vector<4x128xf32>
    %70 = arith.addf %64, %69 : vector<4x128xf32>
    %71 = arith.divf %68, %70 : vector<4x128xf32>
    %72 = arith.select %66, %71, %64 : vector<4x128xi1>, vector<4x128xf32>
    %73 = arith.mulf %72, %72 : vector<4x128xf32>
    %cst_24 = arith.constant 0.0805374458 : f32
    %74 = vector.broadcast %cst_24 : f32 to vector<4x128xf32>
    %75 = arith.mulf %74, %73 : vector<4x128xf32>
    %cst_25 = arith.constant 0.138776854 : f32
    %76 = vector.broadcast %cst_25 : f32 to vector<4x128xf32>
    %77 = arith.subf %75, %76 : vector<4x128xf32>
    %78 = arith.mulf %77, %73 : vector<4x128xf32>
    %cst_26 = arith.constant 0.199777111 : f32
    %79 = vector.broadcast %cst_26 : f32 to vector<4x128xf32>
    %80 = arith.addf %78, %79 : vector<4x128xf32>
    %81 = arith.mulf %80, %73 : vector<4x128xf32>
    %cst_27 = arith.constant 0.333329499 : f32
    %82 = vector.broadcast %cst_27 : f32 to vector<4x128xf32>
    %83 = arith.subf %81, %82 : vector<4x128xf32>
    %84 = arith.mulf %83, %73 : vector<4x128xf32>
    %85 = arith.mulf %84, %72 : vector<4x128xf32>
    %86 = arith.addf %85, %72 : vector<4x128xf32>
    %cst_28 = arith.constant 0.785398185 : f32
    %87 = vector.broadcast %cst_28 : f32 to vector<4x128xf32>
    %88 = arith.addf %86, %87 : vector<4x128xf32>
    %89 = arith.select %66, %88, %86 : vector<4x128xi1>, vector<4x128xf32>
    %90 = arith.cmpf ogt, %52, %51 : vector<4x128xf32>
    %cst_29 = arith.constant 1.57079637 : f32
    %91 = vector.broadcast %cst_29 : f32 to vector<4x128xf32>
    %92 = arith.subf %91, %89 : vector<4x128xf32>
    %93 = arith.select %90, %92, %89 : vector<4x128xi1>, vector<4x128xf32>
    %cst_30 = arith.constant 0.000000e+00 : f32
    %94 = vector.broadcast %cst_30 : f32 to vector<4x128xf32>
    %95 = arith.cmpf olt, %42, %94 : vector<4x128xf32>
    %cst_31 = arith.constant 3.14159274 : f32
    %96 = vector.broadcast %cst_31 : f32 to vector<4x128xf32>
    %97 = arith.subf %96, %93 : vector<4x128xf32>
    %98 = arith.select %95, %97, %93 : vector<4x128xi1>, vector<4x128xf32>
    %cst_32 = arith.constant 0.000000e+00 : f32
    %99 = vector.broadcast %cst_32 : f32 to vector<4x128xf32>
    %100 = arith.cmpf olt, %46, %99 : vector<4x128xf32>
    %cst_33 = arith.constant 0.000000e+00 : f32
    %101 = vector.broadcast %cst_33 : f32 to vector<4x128xf32>
    %102 = arith.subf %101, %98 : vector<4x128xf32>
    %103 = arith.select %100, %102, %98 : vector<4x128xi1>, vector<4x128xf32>
    %cst_34 = arith.constant 40.7436638 : f32
    %104 = vector.broadcast %cst_34 : f32 to vector<4x128xf32>
    %105 = arith.mulf %103, %104 : vector<4x128xf32>
    %cst_35 = arith.constant 1.280000e+02 : f32
    %106 = vector.broadcast %cst_35 : f32 to vector<4x128xf32>
    %107 = arith.addf %105, %106 : vector<4x128xf32>
    %108 = math.floor %107 : vector<4x128xf32>
    %109 = arith.fptosi %108 : vector<4x128xf32> to vector<4x128xi32>
    %c255_i32 = arith.constant 255 : i32
    %110 = vector.broadcast %c255_i32 : i32 to vector<4x128xi32>
    %111 = arith.andi %109, %110 : vector<4x128xi32>
    %112 = vector.shape_cast %111 : vector<4x128xi32> to vector<1x512xi32>
    %113 = vector.shape_cast %50 : vector<4x128xf32> to vector<1x512xf32>
    %c0_36 = arith.constant 0 : index
    %c0_37 = arith.constant 0 : index
    %114 = vector.load %arg4[%c0_36, %c0_37] : memref<256x512xi32, #tpu.memory_space<vmem>>, vector<256x512xi32>
    %115 = vector.broadcast %112 : vector<1x512xi32> to vector<256x512xi32>
    %116 = arith.cmpi eq, %114, %115 : vector<256x512xi32>
    %117 = arith.extui %116 : vector<256x512xi1> to vector<256x512xi32>
    %118 = arith.sitofp %117 : vector<256x512xi32> to vector<256x512xf32>
    %119 = arith.truncf %118 : vector<256x512xf32> to vector<256x512xbf16>
    %c0_38 = arith.constant 0 : index
    %c0_39 = arith.constant 0 : index
    %120 = vector.load %arg3[%c0_38, %c0_39] : memref<6x256xbf16, #tpu.memory_space<vmem>>, vector<6x256xbf16>
    %cst_40 = arith.constant dense<0.000000e+00> : vector<6x512xf32>
    %121 = tpu.matmul %120, %119, %cst_40 {dimension_numbers = #tpu.dot_dimension_numbers<[1], [0], [0], [1], [0, 0, 1, 1], [], []>} : vector<6x256xbf16>, vector<256x512xbf16>, vector<6x512xf32> -> vector<6x512xf32>
    %122 = vector.extract_strided_slice %121 {offsets = [0, 0], sizes = [3, 512], strides = [1, 1]} : vector<6x512xf32> to vector<3x512xf32>
    %123 = vector.extract_strided_slice %121 {offsets = [3, 0], sizes = [3, 512], strides = [1, 1]} : vector<6x512xf32> to vector<3x512xf32>
    %124 = arith.addf %122, %123 : vector<3x512xf32>
    %125 = vector.broadcast %113 : vector<1x512xf32> to vector<3x512xf32>
    %126 = arith.mulf %124, %125 : vector<3x512xf32>
    %c0_41 = arith.constant 0 : index
    %c0_42 = arith.constant 0 : index
    %127 = vector.load %arg5[%c0_41, %c0_42] : memref<3x512xf32, #tpu.memory_space<vmem>>, vector<3x512xf32>
    tpu.vector_store %arg5[%c0_41, %c0_42], %126 {strides = array<i32>} : memref<3x512xf32, #tpu.memory_space<vmem>>, vector<3x512xf32>,
    return
  }
  func.func @transform_0(%arg0: i32) -> (i32, i32, i32) {
    %c0_i32 = arith.constant 0 : i32
    %c0_i32_0 = arith.constant 0 : i32
    %c0_i32_1 = arith.constant 0 : i32
    return %c0_i32, %arg0, %c0_i32_0 : i32, i32, i32
  }
  func.func @transform_1(%arg0: i32) -> (i32, i32, i32) {
    %c0_i32 = arith.constant 0 : i32
    %c0_i32_0 = arith.constant 0 : i32
    %c0_i32_1 = arith.constant 0 : i32
    return %c0_i32, %arg0, %c0_i32_0 : i32, i32, i32
  }
  func.func @transform_2(%arg0: i32) -> (i32, i32) {
    %c0_i32 = arith.constant 0 : i32
    %c0_i32_0 = arith.constant 0 : i32
    %c0_i32_1 = arith.constant 0 : i32
    return %c0_i32, %c0_i32_0 : i32, i32
  }
  func.func @transform_3(%arg0: i32) -> (i32, i32) {
    %c0_i32 = arith.constant 0 : i32
    %c0_i32_0 = arith.constant 0 : i32
    %c0_i32_1 = arith.constant 0 : i32
    return %c0_i32, %c0_i32_0 : i32, i32
  }
  func.func @transform_4(%arg0: i32) -> (i32, i32) {
    %c0_i32 = arith.constant 0 : i32
    %c0_i32_0 = arith.constant 0 : i32
    return %c0_i32, %arg0 : i32, i32
  }
}

</mosaic_0001>

<llo_original>
// kernel: tpu_custom_call.1
$region0: #{tpu_custom_call.1}
  #allocation0 [shape = 'u32[]', space=smem, size = 0x4, offset = 0x4, fixed_abs, tag = 'smem constant byte address 0x4 - core index']
  #allocation1 [shape = 'u32[72,128]{1,0:T(1,128)}', space=vmem, size = 0x9000, scoped, tag = 'internal scratch']
  %s0 = inlined_call_operand.hbm [shape: f32[3,4,128], index: 0, kind: input, shape index: {}]
  %s1 = inlined_call_operand.hbm [shape: f32[4,4,128], index: 1, kind: input, shape index: {}]
  %s2 = inlined_call_operand.hbm [shape: bf16[6,256], index: 2, kind: input, shape index: {}]
  %s3 = inlined_call_operand.hbm [shape: s32[256,512], index: 3, kind: input, shape index: {}]
  %s4 = inlined_call_operand.hbm [shape: f32[3,512], index: 4, kind: output, shape index: {}]
  %s5 = sld [smem:[#allocation0]]
  $region42: #{tpu_custom_call.1} parent=0
    _
  %s7 = ssub.s32 1, %s5
  %s8 = scalar_select 0, %s7, %s5
  $region1: #{tpu_custom_call.1} parent=0
    #allocation2 [shape = 'u8[6144]{0}', space=vmem, size = 0x1800, scoped, tag = 'input window, operand 0, single buffered']
    #allocation3 [shape = 's32[1]{0}', space=sflag, size = 0x4, scoped, tag = 'scoped memory for tpu_custom_call.1']
    #allocation4 [shape = 's32[1]{0}', space=sflag, size = 0x4, scoped, tag = 'scoped memory for tpu_custom_call.1']
    #allocation5 [shape = 'u8[8192]{0}', space=vmem, size = 0x2000, scoped, tag = 'input window, operand 1, single buffered']
    #allocation6 [shape = 's32[1]{0}', space=sflag, size = 0x4, scoped, tag = 'scoped memory for tpu_custom_call.1']
    #allocation7 [shape = 'u8[4096]{0}', space=vmem, size = 0x1000, scoped, tag = 'input window, operand 2, single buffered']
    #allocation8 [shape = 'u8[524288]{0}', space=vmem, size = 0x80000, scoped, tag = 'input window, operand 3, single buffered']
    #allocation9 [shape = 's32[1]{0}', space=sflag, size = 0x4, scoped, tag = 'scoped memory for tpu_custom_call.1']
    #allocation10 [shape = 'u8[8192]{0}', space=vmem, size = 0x2000, scoped, tag = 'output window, operand 0, single buffered']
    %9 = vsyncpa [#allocation3], 0
    %10 = vsyncpa [#allocation6], 0
    %11 = vsyncpa [#allocation9], 0
    %12 = vsyncpa [#allocation4], 0
    // Predicated region
    $region2: #{tpu_custom_call.1} parent=1 // pred_check
      _
    $region3: #{tpu_custom_call.1} parent=1 // pred_check_branch
      %14 = sbr.rel (0) target = $region5
    $region4: #{tpu_custom_call.1} parent=1 // pred_region
      %16 = vsyncadd [#allocation3], 0
      %s17 = sshll.u32 %s0, 4
      %s18 = int_to_ptr.hbm [resolvable:$true] %s17
      %s19 = sshll.u32 [#allocation2], 4
      %s20 = int_to_ptr.vmem [resolvable:$true] %s19
      %25 = dma.hbm_to_vmem [thread:$0]  %s18, 192, %s20, [#allocation3], 64, 64, 4
    $region5: #{tpu_custom_call.1} parent=1 // pred_fallthru
      _
    // Predicated region
    $region6: #{tpu_custom_call.1} parent=1 // pred_check
      _
    $region7: #{tpu_custom_call.1} parent=1 // pred_check_branch
      %27 = sbr.rel (0) target = $region9
    $region8: #{tpu_custom_call.1} parent=1 // pred_region
      %29 = vsyncadd [#allocation6], 0
      %s30 = sshll.u32 %s1, 4
      %s31 = int_to_ptr.hbm [resolvable:$true] %s30
      %s32 = sshll.u32 [#allocation5], 4
      %s33 = int_to_ptr.vmem [resolvable:$true] %s32
      %38 = dma.hbm_to_vmem [thread:$0]  %s31, 256, %s33, [#allocation6], 64, 64, 4
    $region9: #{tpu_custom_call.1} parent=1 // pred_fallthru
      _
    // Predicated region
    $region10: #{tpu_custom_call.1} parent=1 // pred_check
      _
    $region11: #{tpu_custom_call.1} parent=1 // pred_check_branch
      %40 = sbr.rel (0) target = $region13
    $region12: #{tpu_custom_call.1} parent=1 // pred_region
      %42 = vsyncadd [#allocation6], 0
      %s44 = sshll.u32 %s2, 4
      %s45 = int_to_ptr.hbm [resolvable:$true] %s44
      %s46 = sshll.u32 [#allocation7], 4
      %s47 = int_to_ptr.vmem [resolvable:$true] %s46
      %49 = dma.hbm_to_vmem [thread:$0]  %s45, 128, %s47, [#allocation6]
    $region13: #{tpu_custom_call.1} parent=1 // pred_fallthru
      _
    // Predicated region
    $region14: #{tpu_custom_call.1} parent=1 // pred_check
      _
    $region15: #{tpu_custom_call.1} parent=1 // pred_check_branch
      %51 = sbr.rel (0) target = $region17
    $region16: #{tpu_custom_call.1} parent=1 // pred_region
      %53 = vsyncadd [#allocation9], 0
      %s54 = sshll.u32 %s3, 4
      %s55 = int_to_ptr.hbm [resolvable:$true] %s54
      %s56 = sshll.u32 [#allocation8], 4
      %s57 = int_to_ptr.vmem [resolvable:$true] %s56
      %62 = dma.hbm_to_vmem [thread:$0]  %s55, 16384, %s57, [#allocation9], 512, 512, 32
    $region17: #{tpu_custom_call.1} parent=1 // pred_fallthru
      _
    // Predicated region
    $region18: #{tpu_custom_call.1} parent=1 // pred_check
      _
    $region19: #{tpu_custom_call.1} parent=1 // pred_check_branch
      %64 = sbr.rel (0) target = $region21
    $region20: #{tpu_custom_call.1} parent=1 // pred_region
      %66 = dma.done [#allocation3], 192
    $region21: #{tpu_custom_call.1} parent=1 // pred_fallthru
      _
    // Predicated region
    $region22: #{tpu_custom_call.1} parent=1 // pred_check
      _
    $region23: #{tpu_custom_call.1} parent=1 // pred_check_branch
      %68 = sbr.rel (0) target = $region25
    $region24: #{tpu_custom_call.1} parent=1 // pred_region
      %70 = dma.done [#allocation6], 256
    $region25: #{tpu_custom_call.1} parent=1 // pred_fallthru
      _
    // Predicated region
    $region26: #{tpu_custom_call.1} parent=1 // pred_check
      _
    $region27: #{tpu_custom_call.1} parent=1 // pred_check_branch
      %72 = sbr.rel (0) target = $region29
    $region28: #{tpu_custom_call.1} parent=1 // pred_region
      %74 = dma.done [#allocation6], 128
    $region29: #{tpu_custom_call.1} parent=1 // pred_fallthru
      _
    // Predicated region
    $region30: #{tpu_custom_call.1} parent=1 // pred_check
      _
    $region31: #{tpu_custom_call.1} parent=1 // pred_check_branch
      %76 = sbr.rel (0) target = $region33
    $region32: #{tpu_custom_call.1} parent=1 // pred_region
      %78 = dma.done [#allocation9], 16384
    $region33: #{tpu_custom_call.1} parent=1 // pred_fallthru
      _
    %v79 = vld [vmem:[#allocation2] sm:$0xf]
    %s80 = scalar_lea.vmem [#allocation2], 4
    %v81 = vld [vmem:[%s80] sm:$0xf]
    %s82 = scalar_lea.vmem [#allocation2], 8
    %v83 = vld [vmem:[%s82] sm:$0xf]
    %v84 = vld [vmem:[#allocation5] sm:$0xf]
    %s85 = scalar_lea.vmem [#allocation5], 4
    %v86 = vld [vmem:[%s85] sm:$0xf]
    %s87 = scalar_lea.vmem [#allocation5], 8
    %v88 = vld [vmem:[%s87] sm:$0xf]
    %s89 = scalar_lea.vmem [#allocation5], 12
    %v90 = vld [vmem:[%s89] sm:$0xf]
    %v91 = vmul.f32 %v79, %v86
    %v92 = vmul.f32 %v81, %v88
    %v93 = vadd.f32 %v91, %v92
    %v94 = vmul.f32 %v83, %v90
    %v95 = vadd.f32 %v93, %v94
    %v96 = vsub.f32 0.0, %v95
    %v97 = vmul.f32 %v79, %v84
    %v98 = vmul.f32 %v81, %v90
    %v99 = vadd.f32 %v97, %v98
    %v100 = vmul.f32 %v83, %v88
    %v101 = vsub.f32 %v99, %v100
    %v102 = vmul.f32 %v81, %v84
    %v103 = vmul.f32 %v83, %v86
    %v104 = vadd.f32 %v102, %v103
    %v105 = vmul.f32 %v79, %v90
    %v106 = vsub.f32 %v104, %v105
    %v107 = vmul.f32 %v83, %v84
    %v108 = vmul.f32 %v79, %v88
    %v109 = vadd.f32 %v107, %v108
    %v110 = vmul.f32 %v81, %v86
    %v111 = vsub.f32 %v109, %v110
    %v112 = vmul.f32 %v101, %v101
    %v113 = vmul.f32 %v106, %v106
    %v114 = vadd.f32 %v112, %v113
    %v115 = vmul.f32 %v111, %v111
    %v116 = vadd.f32 %v114, %v115
    %v117 = vmul.f32 %v96, %v96
    %v118 = vsub.f32 %v117, %v116
    %v119 = vmul.f32 %v96, 2.0
    %v120 = vrsqrt.pop %v116
    %v121 = vmul.f32 %v120, %v116
    %v122 = vmul.f32 %v121, %v120
    %v123 = vmul.f32 0.5, %v122
    %v124 = vsub.f32 1.5, %v123
    %v125 = vmul.f32 %v120, %v124
    %v126 = vmul.f32 %v116, %v125
    %vm127 = vcmp.eq.f32.partialorder %v116, inf
    %v128 = vsel %vm127, %v116, %v126
    %vm129 = vcmp.eq.f32.partialorder %v116, 0.0
    %v130 = vand.u32 %v116, 2147483648
    %v131 = vsel %vm129, %v130, %v128
    %v132 = vmul.f32 %v119, %v131
    %v133 = vmul.f32 %v118, %v118
    %v134 = vmul.f32 %v132, %v132
    %v135 = vadd.f32 %v133, %v134
    %v136 = vrsqrt.pop %v135
    %v137 = vmul.f32 %v136, %v135
    %v138 = vmul.f32 %v137, %v136
    %v139 = vmul.f32 0.5, %v138
    %v140 = vsub.f32 1.5, %v139
    %v141 = vmul.f32 %v136, %v140
    %v142 = vmul.f32 %v135, %v141
    %vm143 = vcmp.eq.f32.partialorder %v135, inf
    %v144 = vsel %vm143, %v135, %v142
    %vm145 = vcmp.eq.f32.partialorder %v135, 0.0
    %v146 = vand.u32 %v135, 2147483648
    %v147 = vsel %vm145, %v146, %v144
    %v148 = vand.u32 2147483647, %v118
    %v149 = vand.u32 2147483647, %v132
    %v150 = vmax.f32 %v148, %v149
    %v151 = vmin.f32 %v148, %v149
    %vm152 = vcmp.gt.f32.partialorder %v150, 0.0
    %v153 = vsel %vm152, %v150, 1.0
    %v154 = vrcp.pop %v153
    %v155 = vmul.f32 %v153, %v154
    %v156 = vsub.f32 2.0, %v155
    %v157 = vmul.f32 %v154, %v156
    %v158 = vmul.f32 %v151, %v157
    %vm159 = vcmp.gt.f32.partialorder %v158, 0.41421357
    %v160 = vsub.f32 %v158, 1.0
    %v161 = vadd.f32 %v158, 1.0
    %v162 = vrcp.pop %v161
    %v163 = vmul.f32 %v161, %v162
    %v164 = vsub.f32 1.0, %v163
    %v165 = vmul.f32 %v162, %v164
    %v166 = vadd.f32 %v162, %v165
    %vm167 = vweird.f32 %v161
    %vm168 = vweird.f32 %v162
    %vm169 = vmor %vm167, %vm168
    %v170 = vsel %vm169, %v162, %v166
    %v171 = vand.u32 2147483647, %v161
    %vm172 = vcmp.eq.f32.partialorder %v171, 8.507059e+37
    %v173 = vand.u32 %v161, 2147483648
    %v174 = vor.u32 1.1754944e-38, %v173
    %v175 = vsel %vm172, %v174, %v170
    %v176 = vmul.f32 %v160, %v175
    %v177 = vsel %vm159, %v176, %v158
    %v178 = vmul.f32 %v177, %v177
    %v179 = vmul.f32 %v178, 0.080537446
    %v180 = vsub.f32 %v179, 0.13877685
    %v181 = vmul.f32 %v180, %v178
    %v182 = vadd.f32 %v181, 0.19977711
    %v183 = vmul.f32 %v182, %v178
    %v184 = vsub.f32 %v183, 0.3333295
    %v185 = vmul.f32 %v184, %v178
    %v186 = vmul.f32 %v185, %v177
    %v187 = vadd.f32 %v186, %v177
    %v188 = vadd.f32 %v187, 0.7853982
    %v189 = vsel %vm159, %v188, %v187
    %vm190 = vcmp.gt.f32.partialorder %v149, %v148
    %v191 = vsub.f32 1.5707964, %v189
    %v192 = vsel %vm190, %v191, %v189
    %vm193 = vcmp.lt.f32.partialorder %v118, 0.0
    %v194 = vsub.f32 3.1415927, %v192
    %v195 = vsel %vm193, %v194, %v192
    %vm196 = vcmp.lt.f32.partialorder %v132, 0.0
    %v197 = vsub.f32 0.0, %v195
    %v198 = vsel %vm196, %v197, %v195
    %v199 = vmul.f32 %v198, 40.743664
    %v200 = vadd.f32 %v199, 128.0
    %v201 = vfloor.f32 %v200
    %v202 = vcvt.f32.s32.to.zero.pseudo %v201
    %v203 = vand.u32 %v202, 255
    %v205 = vunpack.c.l.s4 1935823168
    %v206 = vunpack.c.0.s8 %v205
    %v207 = vperm.slane %v203, %v206
    %v209 = vunpack.c.l.s4 1935823168
    %v210 = vunpack.c.0.s8 %v209
    %v211 = vperm.slane %v147, %v210
    %v212 = vld [vmem:[#allocation8] sm:$0xff]
    %v213 = vld [vmem:[#allocation8 + $0x8] sm:$0xff]
    %v214 = vld [vmem:[#allocation8 + $0x10] sm:$0xff]
    %v215 = vld [vmem:[#allocation8 + $0x18] sm:$0xff]
    %v216 = vld [vmem:[#allocation8 + $0x20] sm:$0xff]
    %v217 = vld [vmem:[#allocation8 + $0x28] sm:$0xff]
    %v218 = vld [vmem:[#allocation8 + $0x30] sm:$0xff]
    %v219 = vld [vmem:[#allocation8 + $0x38] sm:$0xff]
    %v220 = vld [vmem:[#allocation8 + $0x40] sm:$0xff]
    %v221 = vld [vmem:[#allocation8 + $0x48] sm:$0xff]
    %v222 = vld [vmem:[#allocation8 + $0x50] sm:$0xff]
    %v223 = vld [vmem:[#allocation8 + $0x58] sm:$0xff]
    %v224 = vld [vmem:[#allocation8 + $0x60] sm:$0xff]
    %v225 = vld [vmem:[#allocation8 + $0x68] sm:$0xff]
    %v226 = vld [vmem:[#allocation8 + $0x70] sm:$0xff]
    %v227 = vld [vmem:[#allocation8 + $0x78] sm:$0xff]
    %v228 = vld [vmem:[#allocation8 + $0x80] sm:$0xff]
    %v229 = vld [vmem:[#allocation8 + $0x88] sm:$0xff]
    %v230 = vld [vmem:[#allocation8 + $0x90] sm:$0xff]
    %v231 = vld [vmem:[#allocation8 + $0x98] sm:$0xff]
    %v232 = vld [vmem:[#allocation8 + $0xa0] sm:$0xff]
    %v233 = vld [vmem:[#allocation8 + $0xa8] sm:$0xff]
    %v234 = vld [vmem:[#allocation8 + $0xb0] sm:$0xff]
    %v235 = vld [vmem:[#allocation8 + $0xb8] sm:$0xff]
    %v236 = vld [vmem:[#allocation8 + $0xc0] sm:$0xff]
    %v237 = vld [vmem:[#allocation8 + $0xc8] sm:$0xff]
    %v238 = vld [vmem:[#allocation8 + $0xd0] sm:$0xff]
    %v239 = vld [vmem:[#allocation8 + $0xd8] sm:$0xff]
    %v240 = vld [vmem:[#allocation8 + $0xe0] sm:$0xff]
    %v241 = vld [vmem:[#allocation8 + $0xe8] sm:$0xff]
    %v242 = vld [vmem:[#allocation8 + $0xf0] sm:$0xff]
    %v243 = vld [vmem:[#allocation8 + $0xf8] sm:$0xff]
    %v244 = vld [vmem:[#allocation8 + $0x100] sm:$0xff]
    %v245 = vld [vmem:[#allocation8 + $0x108] sm:$0xff]
    %v246 = vld [vmem:[#allocation8 + $0x110] sm:$0xff]
    %v247 = vld [vmem:[#allocation8 + $0x118] sm:$0xff]
    %v248 = vld [vmem:[#allocation8 + $0x120] sm:$0xff]
    %v249 = vld [vmem:[#allocation8 + $0x128] sm:$0xff]
    %v250 = vld [vmem:[#allocation8 + $0x130] sm:$0xff]
    %v251 = vld [vmem:[#allocation8 + $0x138] sm:$0xff]
    %v252 = vld [vmem:[#allocation8 + $0x140] sm:$0xff]
    %v253 = vld [vmem:[#allocation8 + $0x148] sm:$0xff]
    %v254 = vld [vmem:[#allocation8 + $0x150] sm:$0xff]
    %v255 = vld [vmem:[#allocation8 + $0x158] sm:$0xff]
    %v256 = vld [vmem:[#allocation8 + $0x160] sm:$0xff]
    %v257 = vld [vmem:[#allocation8 + $0x168] sm:$0xff]
    %v258 = vld [vmem:[#allocation8 + $0x170] sm:$0xff]
    %v259 = vld [vmem:[#allocation8 + $0x178] sm:$0xff]
    %v260 = vld [vmem:[#allocation8 + $0x180] sm:$0xff]
    %v261 = vld [vmem:[#allocation8 + $0x188] sm:$0xff]
    %v262 = vld [vmem:[#allocation8 + $0x190] sm:$0xff]
    %v263 = vld [vmem:[#allocation8 + $0x198] sm:$0xff]
    %v264 = vld [vmem:[#allocation8 + $0x1a0] sm:$0xff]
    %v265 = vld [vmem:[#allocation8 + $0x1a8] sm:$0xff]
    %v266 = vld [vmem:[#allocation8 + $0x1b0] sm:$0xff]
    %v267 = vld [vmem:[#allocation8 + $0x1b8] sm:$0xff]
    %v268 = vld [vmem:[#allocation8 + $0x1c0] sm:$0xff]
    %v269 = vld [vmem:[#allocation8 + $0x1c8] sm:$0xff]
    %v270 = vld [vmem:[#allocation8 + $0x1d0] sm:$0xff]
    %v271 = vld [vmem:[#allocation8 + $0x1d8] sm:$0xff]
    %v272 = vld [vmem:[#allocation8 + $0x1e0] sm:$0xff]
    %v273 = vld [vmem:[#allocation8 + $0x1e8] sm:$0xff]
    %v274 = vld [vmem:[#allocation8 + $0x1f0] sm:$0xff]
    %v275 = vld [vmem:[#allocation8 + $0x1f8] sm:$0xff]
    %v276 = vld [vmem:[#allocation8 + $0x200] sm:$0xff]
    %v277 = vld [vmem:[#allocation8 + $0x208] sm:$0xff]
    %v278 = vld [vmem:[#allocation8 + $0x210] sm:$0xff]
    %v279 = vld [vmem:[#allocation8 + $0x218] sm:$0xff]
    %v280 = vld [vmem:[#allocation8 + $0x220] sm:$0xff]
    %v281 = vld [vmem:[#allocation8 + $0x228] sm:$0xff]
    %v282 = vld [vmem:[#allocation8 + $0x230] sm:$0xff]
    %v283 = vld [vmem:[#allocation8 + $0x238] sm:$0xff]
    %v284 = vld [vmem:[#allocation8 + $0x240] sm:$0xff]
    %v285 = vld [vmem:[#allocation8 + $0x248] sm:$0xff]
    %v286 = vld [vmem:[#allocation8 + $0x250] sm:$0xff]
    %v287 = vld [vmem:[#allocation8 + $0x258] sm:$0xff]
    %v288 = vld [vmem:[#allocation8 + $0x260] sm:$0xff]
    %v289 = vld [vmem:[#allocation8 + $0x268] sm:$0xff]
    %v290 = vld [vmem:[#allocation8 + $0x270] sm:$0xff]
    %v291 = vld [vmem:[#allocation8 + $0x278] sm:$0xff]
    %v292 = vld [vmem:[#allocation8 + $0x280] sm:$0xff]
    %v293 = vld [vmem:[#allocation8 + $0x288] sm:$0xff]
    %v294 = vld [vmem:[#allocation8 + $0x290] sm:$0xff]
    %v295 = vld [vmem:[#allocation8 + $0x298] sm:$0xff]
    %v296 = vld [vmem:[#allocation8 + $0x2a0] sm:$0xff]
    %v297 = vld [vmem:[#allocation8 + $0x2a8] sm:$0xff]
    %v298 = vld [vmem:[#allocation8 + $0x2b0] sm:$0xff]
    %v299 = vld [vmem:[#allocation8 + $0x2b8] sm:$0xff]
    %v300 = vld [vmem:[#allocation8 + $0x2c0] sm:$0xff]
    %v301 = vld [vmem:[#allocation8 + $0x2c8] sm:$0xff]
    %v302 = vld [vmem:[#allocation8 + $0x2d0] sm:$0xff]
    %v303 = vld [vmem:[#allocation8 + $0x2d8] sm:$0xff]
    %v304 = vld [vmem:[#allocation8 + $0x2e0] sm:$0xff]
    %v305 = vld [vmem:[#allocation8 + $0x2e8] sm:$0xff]
    %v306 = vld [vmem:[#allocation8 + $0x2f0] sm:$0xff]
    %v307 = vld [vmem:[#allocation8 + $0x2f8] sm:$0xff]
    %v308 = vld [vmem:[#allocation8 + $0x300] sm:$0xff]
    %v309 = vld [vmem:[#allocation8 + $0x308] sm:$0xff]
    %v310 = vld [vmem:[#allocation8 + $0x310] sm:$0xff]
    %v311 = vld [vmem:[#allocation8 + $0x318] sm:$0xff]
    %v312 = vld [vmem:[#allocation8 + $0x320] sm:$0xff]
    %v313 = vld [vmem:[#allocation8 + $0x328] sm:$0xff]
    %v314 = vld [vmem:[#allocation8 + $0x330] sm:$0xff]
    %v315 = vld [vmem:[#allocation8 + $0x338] sm:$0xff]
    %v316 = vld [vmem:[#allocation8 + $0x340] sm:$0xff]
    %v317 = vld [vmem:[#allocation8 + $0x348] sm:$0xff]
    %v318 = vld [vmem:[#allocation8 + $0x350] sm:$0xff]
    %v319 = vld [vmem:[#allocation8 + $0x358] sm:$0xff]
    %v320 = vld [vmem:[#allocation8 + $0x360] sm:$0xff]
    %v321 = vld [vmem:[#allocation8 + $0x368] sm:$0xff]
    %v322 = vld [vmem:[#allocation8 + $0x370] sm:$0xff]
    %v323 = vld [vmem:[#allocation8 + $0x378] sm:$0xff]
    %v324 = vld [vmem:[#allocation8 + $0x380] sm:$0xff]
    %v325 = vld [vmem:[#allocation8 + $0x388] sm:$0xff]
    %v326 = vld [vmem:[#allocation8 + $0x390] sm:$0xff]
    %v327 = vld [vmem:[#allocation8 + $0x398] sm:$0xff]
    %v328 = vld [vmem:[#allocation8 + $0x3a0] sm:$0xff]
    %v329 = vld [vmem:[#allocation8 + $0x3a8] sm:$0xff]
    %v330 = vld [vmem:[#allocation8 + $0x3b0] sm:$0xff]
    %v331 = vld [vmem:[#allocation8 + $0x3b8] sm:$0xff]
    %v332 = vld [vmem:[#allocation8 + $0x3c0] sm:$0xff]
    %v333 = vld [vmem:[#allocation8 + $0x3c8] sm:$0xff]
    %v334 = vld [vmem:[#allocation8 + $0x3d0] sm:$0xff]
    %v335 = vld [vmem:[#allocation8 + $0x3d8] sm:$0xff]
    %v336 = vld [vmem:[#allocation8 + $0x3e0] sm:$0xff]
    %v337 = vld [vmem:[#allocation8 + $0x3e8] sm:$0xff]
    %v338 = vld [vmem:[#allocation8 + $0x3f0] sm:$0xff]
    %v339 = vld [vmem:[#allocation8 + $0x3f8] sm:$0xff]
    %v340 = vperm.slane %v207, 0
    %v341 = vperm.slane %v207, 2
    %v342 = vperm.slane %v207, 4
    %v343 = vperm.slane %v207, 6
    %v344 = vperm.slane %v340, 0
    %v345 = vperm.slane %v341, 0
    %v346 = vperm.slane %v342, 0
    %v347 = vperm.slane %v343, 0
    %vm348 = vcmp.eq.s32.totalorder %v212, %v344
    %vm349 = vcmp.eq.s32.totalorder %v213, %v345
    %vm350 = vcmp.eq.s32.totalorder %v214, %v346
    %vm351 = vcmp.eq.s32.totalorder %v215, %v347
    %vm352 = vcmp.eq.s32.totalorder %v216, %v344
    %vm353 = vcmp.eq.s32.totalorder %v217, %v345
    %vm354 = vcmp.eq.s32.totalorder %v218, %v346
    %vm355 = vcmp.eq.s32.totalorder %v219, %v347
    %vm356 = vcmp.eq.s32.totalorder %v220, %v344
    %vm357 = vcmp.eq.s32.totalorder %v221, %v345
    %vm358 = vcmp.eq.s32.totalorder %v222, %v346
    %vm359 = vcmp.eq.s32.totalorder %v223, %v347
    %vm360 = vcmp.eq.s32.totalorder %v224, %v344
    %vm361 = vcmp.eq.s32.totalorder %v225, %v345
    %vm362 = vcmp.eq.s32.totalorder %v226, %v346
    %vm363 = vcmp.eq.s32.totalorder %v227, %v347
    %vm364 = vcmp.eq.s32.totalorder %v228, %v344
    %vm365 = vcmp.eq.s32.totalorder %v229, %v345
    %vm366 = vcmp.eq.s32.totalorder %v230, %v346
    %vm367 = vcmp.eq.s32.totalorder %v231, %v347
    %vm368 = vcmp.eq.s32.totalorder %v232, %v344
    %vm369 = vcmp.eq.s32.totalorder %v233, %v345
    %vm370 = vcmp.eq.s32.totalorder %v234, %v346
    %vm371 = vcmp.eq.s32.totalorder %v235, %v347
    %vm372 = vcmp.eq.s32.totalorder %v236, %v344
    %vm373 = vcmp.eq.s32.totalorder %v237, %v345
    %vm374 = vcmp.eq.s32.totalorder %v238, %v346
    %vm375 = vcmp.eq.s32.totalorder %v239, %v347
    %vm376 = vcmp.eq.s32.totalorder %v240, %v344
    %vm377 = vcmp.eq.s32.totalorder %v241, %v345
    %vm378 = vcmp.eq.s32.totalorder %v242, %v346
    %vm379 = vcmp.eq.s32.totalorder %v243, %v347
    %vm380 = vcmp.eq.s32.totalorder %v244, %v344
    %vm381 = vcmp.eq.s32.totalorder %v245, %v345
    %vm382 = vcmp.eq.s32.totalorder %v246, %v346
    %vm383 = vcmp.eq.s32.totalorder %v247, %v347
    %vm384 = vcmp.eq.s32.totalorder %v248, %v344
    %vm385 = vcmp.eq.s32.totalorder %v249, %v345
    %vm386 = vcmp.eq.s32.totalorder %v250, %v346
    %vm387 = vcmp.eq.s32.totalorder %v251, %v347
    %vm388 = vcmp.eq.s32.totalorder %v252, %v344
    %vm389 = vcmp.eq.s32.totalorder %v253, %v345
    %vm390 = vcmp.eq.s32.totalorder %v254, %v346
    %vm391 = vcmp.eq.s32.totalorder %v255, %v347
    %vm392 = vcmp.eq.s32.totalorder %v256, %v344
    %vm393 = vcmp.eq.s32.totalorder %v257, %v345
    %vm394 = vcmp.eq.s32.totalorder %v258, %v346
    %vm395 = vcmp.eq.s32.totalorder %v259, %v347
    %vm396 = vcmp.eq.s32.totalorder %v260, %v344
    %vm397 = vcmp.eq.s32.totalorder %v261, %v345
    %vm398 = vcmp.eq.s32.totalorder %v262, %v346
    %vm399 = vcmp.eq.s32.totalorder %v263, %v347
    %vm400 = vcmp.eq.s32.totalorder %v264, %v344
    %vm401 = vcmp.eq.s32.totalorder %v265, %v345
    %vm402 = vcmp.eq.s32.totalorder %v266, %v346
    %vm403 = vcmp.eq.s32.totalorder %v267, %v347
    %vm404 = vcmp.eq.s32.totalorder %v268, %v344
    %vm405 = vcmp.eq.s32.totalorder %v269, %v345
    %vm406 = vcmp.eq.s32.totalorder %v270, %v346
    %vm407 = vcmp.eq.s32.totalorder %v271, %v347
    %vm408 = vcmp.eq.s32.totalorder %v272, %v344
    %vm409 = vcmp.eq.s32.totalorder %v273, %v345
    %vm410 = vcmp.eq.s32.totalorder %v274, %v346
    %vm411 = vcmp.eq.s32.totalorder %v275, %v347
    %vm412 = vcmp.eq.s32.totalorder %v276, %v344
    %vm413 = vcmp.eq.s32.totalorder %v277, %v345
    %vm414 = vcmp.eq.s32.totalorder %v278, %v346
    %vm415 = vcmp.eq.s32.totalorder %v279, %v347
    %vm416 = vcmp.eq.s32.totalorder %v280, %v344
    %vm417 = vcmp.eq.s32.totalorder %v281, %v345
    %vm418 = vcmp.eq.s32.totalorder %v282, %v346
    %vm419 = vcmp.eq.s32.totalorder %v283, %v347
    %vm420 = vcmp.eq.s32.totalorder %v284, %v344
    %vm421 = vcmp.eq.s32.totalorder %v285, %v345
    %vm422 = vcmp.eq.s32.totalorder %v286, %v346
    %vm423 = vcmp.eq.s32.totalorder %v287, %v347
    %vm424 = vcmp.eq.s32.totalorder %v288, %v344
    %vm425 = vcmp.eq.s32.totalorder %v289, %v345
    %vm426 = vcmp.eq.s32.totalorder %v290, %v346
    %vm427 = vcmp.eq.s32.totalorder %v291, %v347
    %vm428 = vcmp.eq.s32.totalorder %v292, %v344
    %vm429 = vcmp.eq.s32.totalorder %v293, %v345
    %vm430 = vcmp.eq.s32.totalorder %v294, %v346
    %vm431 = vcmp.eq.s32.totalorder %v295, %v347
    %vm432 = vcmp.eq.s32.totalorder %v296, %v344
    %vm433 = vcmp.eq.s32.totalorder %v297, %v345
    %vm434 = vcmp.eq.s32.totalorder %v298, %v346
    %vm435 = vcmp.eq.s32.totalorder %v299, %v347
    %vm436 = vcmp.eq.s32.totalorder %v300, %v344
    %vm437 = vcmp.eq.s32.totalorder %v301, %v345
    %vm438 = vcmp.eq.s32.totalorder %v302, %v346
    %vm439 = vcmp.eq.s32.totalorder %v303, %v347
    %vm440 = vcmp.eq.s32.totalorder %v304, %v344
    %vm441 = vcmp.eq.s32.totalorder %v305, %v345
    %vm442 = vcmp.eq.s32.totalorder %v306, %v346
    %vm443 = vcmp.eq.s32.totalorder %v307, %v347
    %vm444 = vcmp.eq.s32.totalorder %v308, %v344
    %vm445 = vcmp.eq.s32.totalorder %v309, %v345
    %vm446 = vcmp.eq.s32.totalorder %v310, %v346
    %vm447 = vcmp.eq.s32.totalorder %v311, %v347
    %vm448 = vcmp.eq.s32.totalorder %v312, %v344
    %vm449 = vcmp.eq.s32.totalorder %v313, %v345
    %vm450 = vcmp.eq.s32.totalorder %v314, %v346
    %vm451 = vcmp.eq.s32.totalorder %v315, %v347
    %vm452 = vcmp.eq.s32.totalorder %v316, %v344
    %vm453 = vcmp.eq.s32.totalorder %v317, %v345
    %vm454 = vcmp.eq.s32.totalorder %v318, %v346
    %vm455 = vcmp.eq.s32.totalorder %v319, %v347
    %vm456 = vcmp.eq.s32.totalorder %v320, %v344
    %vm457 = vcmp.eq.s32.totalorder %v321, %v345
    %vm458 = vcmp.eq.s32.totalorder %v322, %v346
    %vm459 = vcmp.eq.s32.totalorder %v323, %v347
    %vm460 = vcmp.eq.s32.totalorder %v324, %v344
    %vm461 = vcmp.eq.s32.totalorder %v325, %v345
    %vm462 = vcmp.eq.s32.totalorder %v326, %v346
    %vm463 = vcmp.eq.s32.totalorder %v327, %v347
    %vm464 = vcmp.eq.s32.totalorder %v328, %v344
    %vm465 = vcmp.eq.s32.totalorder %v329, %v345
    %vm466 = vcmp.eq.s32.totalorder %v330, %v346
    %vm467 = vcmp.eq.s32.totalorder %v331, %v347
    %vm468 = vcmp.eq.s32.totalorder %v332, %v344
    %vm469 = vcmp.eq.s32.totalorder %v333, %v345
    %vm470 = vcmp.eq.s32.totalorder %v334, %v346
    %vm471 = vcmp.eq.s32.totalorder %v335, %v347
    %vm472 = vcmp.eq.s32.totalorder %v336, %v344
    %vm473 = vcmp.eq.s32.totalorder %v337, %v345
    %vm474 = vcmp.eq.s32.totalorder %v338, %v346
    %vm475 = vcmp.eq.s32.totalorder %v339, %v347
    %v476 = vsel %vm348, 1, 0
    %v477 = vsel %vm349, 1, 0
    %v478 = vsel %vm350, 1, 0
    %v479 = vsel %vm351, 1, 0
    %v480 = vsel %vm352, 1, 0
    %v481 = vsel %vm353, 1, 0
    %v482 = vsel %vm354, 1, 0
    %v483 = vsel %vm355, 1, 0
    %v484 = vsel %vm356, 1, 0
    %v485 = vsel %vm357, 1, 0
    %v486 = vsel %vm358, 1, 0
    %v487 = vsel %vm359, 1, 0
    %v488 = vsel %vm360, 1, 0
    %v489 = vsel %vm361, 1, 0
    %v490 = vsel %vm362, 1, 0
    %v491 = vsel %vm363, 1, 0
    %v492 = vsel %vm364, 1, 0
    %v493 = vsel %vm365, 1, 0
    %v494 = vsel %vm366, 1, 0
    %v495 = vsel %vm367, 1, 0
    %v496 = vsel %vm368, 1, 0
    %v497 = vsel %vm369, 1, 0
    %v498 = vsel %vm370, 1, 0
    %v499 = vsel %vm371, 1, 0
    %v500 = vsel %vm372, 1, 0
    %v501 = vsel %vm373, 1, 0
    %v502 = vsel %vm374, 1, 0
    %v503 = vsel %vm375, 1, 0
    %v504 = vsel %vm376, 1, 0
    %v505 = vsel %vm377, 1, 0
    %v506 = vsel %vm378, 1, 0
    %v507 = vsel %vm379, 1, 0
    %v508 = vsel %vm380, 1, 0
    %v509 = vsel %vm381, 1, 0
    %v510 = vsel %vm382, 1, 0
    %v511 = vsel %vm383, 1, 0
    %v512 = vsel %vm384, 1, 0
    %v513 = vsel %vm385, 1, 0
    %v514 = vsel %vm386, 1, 0
    %v515 = vsel %vm387, 1, 0
    %v516 = vsel %vm388, 1, 0
    %v517 = vsel %vm389, 1, 0
    %v518 = vsel %vm390, 1, 0
    %v519 = vsel %vm391, 1, 0
    %v520 = vsel %vm392, 1, 0
    %v521 = vsel %vm393, 1, 0
    %v522 = vsel %vm394, 1, 0
    %v523 = vsel %vm395, 1, 0
    %v524 = vsel %vm396, 1, 0
    %v525 = vsel %vm397, 1, 0
    %v526 = vsel %vm398, 1, 0
    %v527 = vsel %vm399, 1, 0
    %v528 = vsel %vm400, 1, 0
    %v529 = vsel %vm401, 1, 0
    %v530 = vsel %vm402, 1, 0
    %v531 = vsel %vm403, 1, 0
    %v532 = vsel %vm404, 1, 0
    %v533 = vsel %vm405, 1, 0
    %v534 = vsel %vm406, 1, 0
    %v535 = vsel %vm407, 1, 0
    %v536 = vsel %vm408, 1, 0
    %v537 = vsel %vm409, 1, 0
    %v538 = vsel %vm410, 1, 0
    %v539 = vsel %vm411, 1, 0
    %v540 = vsel %vm412, 1, 0
    %v541 = vsel %vm413, 1, 0
    %v542 = vsel %vm414, 1, 0
    %v543 = vsel %vm415, 1, 0
    %v544 = vsel %vm416, 1, 0
    %v545 = vsel %vm417, 1, 0
    %v546 = vsel %vm418, 1, 0
    %v547 = vsel %vm419, 1, 0
    %v548 = vsel %vm420, 1, 0
    %v549 = vsel %vm421, 1, 0
    %v550 = vsel %vm422, 1, 0
    %v551 = vsel %vm423, 1, 0
    %v552 = vsel %vm424, 1, 0
    %v553 = vsel %vm425, 1, 0
    %v554 = vsel %vm426, 1, 0
    %v555 = vsel %vm427, 1, 0
    %v556 = vsel %vm428, 1, 0
    %v557 = vsel %vm429, 1, 0
    %v558 = vsel %vm430, 1, 0
    %v559 = vsel %vm431, 1, 0
    %v560 = vsel %vm432, 1, 0
    %v561 = vsel %vm433, 1, 0
    %v562 = vsel %vm434, 1, 0
    %v563 = vsel %vm435, 1, 0
    %v564 = vsel %vm436, 1, 0
    %v565 = vsel %vm437, 1, 0
    %v566 = vsel %vm438, 1, 0
    %v567 = vsel %vm439, 1, 0
    %v568 = vsel %vm440, 1, 0
    %v569 = vsel %vm441, 1, 0
    %v570 = vsel %vm442, 1, 0
    %v571 = vsel %vm443, 1, 0
    %v572 = vsel %vm444, 1, 0
    %v573 = vsel %vm445, 1, 0
    %v574 = vsel %vm446, 1, 0
    %v575 = vsel %vm447, 1, 0
    %v576 = vsel %vm448, 1, 0
    %v577 = vsel %vm449, 1, 0
    %v578 = vsel %vm450, 1, 0
    %v579 = vsel %vm451, 1, 0
    %v580 = vsel %vm452, 1, 0
    %v581 = vsel %vm453, 1, 0
    %v582 = vsel %vm454, 1, 0
    %v583 = vsel %vm455, 1, 0
    %v584 = vsel %vm456, 1, 0
    %v585 = vsel %vm457, 1, 0
    %v586 = vsel %vm458, 1, 0
    %v587 = vsel %vm459, 1, 0
    %v588 = vsel %vm460, 1, 0
    %v589 = vsel %vm461, 1, 0
    %v590 = vsel %vm462, 1, 0
    %v591 = vsel %vm463, 1, 0
    %v592 = vsel %vm464, 1, 0
    %v593 = vsel %vm465, 1, 0
    %v594 = vsel %vm466, 1, 0
    %v595 = vsel %vm467, 1, 0
    %v596 = vsel %vm468, 1, 0
    %v597 = vsel %vm469, 1, 0
    %v598 = vsel %vm470, 1, 0
    %v599 = vsel %vm471, 1, 0
    %v600 = vsel %vm472, 1, 0
    %v601 = vsel %vm473, 1, 0
    %v602 = vsel %vm474, 1, 0
    %v603 = vsel %vm475, 1, 0
    %v604 = vcvt.s32.f32 %v476
    %v605 = vcvt.s32.f32 %v477
    %v606 = vcvt.s32.f32 %v478
    %v607 = vcvt.s32.f32 %v479
    %v608 = vcvt.s32.f32 %v480
    %v609 = vcvt.s32.f32 %v481
    %v610 = vcvt.s32.f32 %v482
    %v611 = vcvt.s32.f32 %v483
    %v612 = vcvt.s32.f32 %v484
    %v613 = vcvt.s32.f32 %v485
    %v614 = vcvt.s32.f32 %v486
    %v615 = vcvt.s32.f32 %v487
    %v616 = vcvt.s32.f32 %v488
    %v617 = vcvt.s32.f32 %v489
    %v618 = vcvt.s32.f32 %v490
    %v619 = vcvt.s32.f32 %v491
    %v620 = vcvt.s32.f32 %v492
    %v621 = vcvt.s32.f32 %v493
    %v622 = vcvt.s32.f32 %v494
    %v623 = vcvt.s32.f32 %v495
    %v624 = vcvt.s32.f32 %v496
    %v625 = vcvt.s32.f32 %v497
    %v626 = vcvt.s32.f32 %v498
    %v627 = vcvt.s32.f32 %v499
    %v628 = vcvt.s32.f32 %v500
    %v629 = vcvt.s32.f32 %v501
    %v630 = vcvt.s32.f32 %v502
    %v631 = vcvt.s32.f32 %v503
    %v632 = vcvt.s32.f32 %v504
    %v633 = vcvt.s32.f32 %v505
    %v634 = vcvt.s32.f32 %v506
    %v635 = vcvt.s32.f32 %v507
    %v636 = vcvt.s32.f32 %v508
    %v637 = vcvt.s32.f32 %v509
    %v638 = vcvt.s32.f32 %v510
    %v639 = vcvt.s32.f32 %v511
    %v640 = vcvt.s32.f32 %v512
    %v641 = vcvt.s32.f32 %v513
    %v642 = vcvt.s32.f32 %v514
    %v643 = vcvt.s32.f32 %v515
    %v644 = vcvt.s32.f32 %v516
    %v645 = vcvt.s32.f32 %v517
    %v646 = vcvt.s32.f32 %v518
    %v647 = vcvt.s32.f32 %v519
    %v648 = vcvt.s32.f32 %v520
    %v649 = vcvt.s32.f32 %v521
    %v650 = vcvt.s32.f32 %v522
    %v651 = vcvt.s32.f32 %v523
    %v652 = vcvt.s32.f32 %v524
    %v653 = vcvt.s32.f32 %v525
    %v654 = vcvt.s32.f32 %v526
    %v655 = vcvt.s32.f32 %v527
    %v656 = vcvt.s32.f32 %v528
    %v657 = vcvt.s32.f32 %v529
    %v658 = vcvt.s32.f32 %v530
    %v659 = vcvt.s32.f32 %v531
    %v660 = vcvt.s32.f32 %v532
    %v661 = vcvt.s32.f32 %v533
    %v662 = vcvt.s32.f32 %v534
    %v663 = vcvt.s32.f32 %v535
    %v664 = vcvt.s32.f32 %v536
    %v665 = vcvt.s32.f32 %v537
    %v666 = vcvt.s32.f32 %v538
    %v667 = vcvt.s32.f32 %v539
    %v668 = vcvt.s32.f32 %v540
    %v669 = vcvt.s32.f32 %v541
    %v670 = vcvt.s32.f32 %v542
    %v671 = vcvt.s32.f32 %v543
    %v672 = vcvt.s32.f32 %v544
    %v673 = vcvt.s32.f32 %v545
    %v674 = vcvt.s32.f32 %v546
    %v675 = vcvt.s32.f32 %v547
    %v676 = vcvt.s32.f32 %v548
    %v677 = vcvt.s32.f32 %v549
    %v678 = vcvt.s32.f32 %v550
    %v679 = vcvt.s32.f32 %v551
    %v680 = vcvt.s32.f32 %v552
    %v681 = vcvt.s32.f32 %v553
    %v682 = vcvt.s32.f32 %v554
    %v683 = vcvt.s32.f32 %v555
    %v684 = vcvt.s32.f32 %v556
    %v685 = vcvt.s32.f32 %v557
    %v686 = vcvt.s32.f32 %v558
    %v687 = vcvt.s32.f32 %v559
    %v688 = vcvt.s32.f32 %v560
    %v689 = vcvt.s32.f32 %v561
    %v690 = vcvt.s32.f32 %v562
    %v691 = vcvt.s32.f32 %v563
    %v692 = vcvt.s32.f32 %v564
    %v693 = vcvt.s32.f32 %v565
    %v694 = vcvt.s32.f32 %v566
    %v695 = vcvt.s32.f32 %v567
    %v696 = vcvt.s32.f32 %v568
    %v697 = vcvt.s32.f32 %v569
    %v698 = vcvt.s32.f32 %v570
    %v699 = vcvt.s32.f32 %v571
    %v700 = vcvt.s32.f32 %v572
    %v701 = vcvt.s32.f32 %v573
    %v702 = vcvt.s32.f32 %v574
    %v703 = vcvt.s32.f32 %v575
    %v704 = vcvt.s32.f32 %v576
    %v705 = vcvt.s32.f32 %v577
    %v706 = vcvt.s32.f32 %v578
    %v707 = vcvt.s32.f32 %v579
    %v708 = vcvt.s32.f32 %v580
    %v709 = vcvt.s32.f32 %v581
    %v710 = vcvt.s32.f32 %v582
    %v711 = vcvt.s32.f32 %v583
    %v712 = vcvt.s32.f32 %v584
    %v713 = vcvt.s32.f32 %v585
    %v714 = vcvt.s32.f32 %v586
    %v715 = vcvt.s32.f32 %v587
    %v716 = vcvt.s32.f32 %v588
    %v717 = vcvt.s32.f32 %v589
    %v718 = vcvt.s32.f32 %v590
    %v719 = vcvt.s32.f32 %v591
    %v720 = vcvt.s32.f32 %v592
    %v721 = vcvt.s32.f32 %v593
    %v722 = vcvt.s32.f32 %v594
    %v723 = vcvt.s32.f32 %v595
    %v724 = vcvt.s32.f32 %v596
    %v725 = vcvt.s32.f32 %v597
    %v726 = vcvt.s32.f32 %v598
    %v727 = vcvt.s32.f32 %v599
    %v728 = vcvt.s32.f32 %v600
    %v729 = vcvt.s32.f32 %v601
    %v730 = vcvt.s32.f32 %v602
    %v731 = vcvt.s32.f32 %v603
    %v732 = vpack.c.bf16 %v608, %v604
    %v733 = vpack.c.bf16 %v609, %v605
    %v734 = vpack.c.bf16 %v610, %v606
    %v735 = vpack.c.bf16 %v611, %v607
    %v736 = vpack.c.bf16 %v616, %v612
    %v737 = vpack.c.bf16 %v617, %v613
    %v738 = vpack.c.bf16 %v618, %v614
    %v739 = vpack.c.bf16 %v619, %v615
    %v740 = vpack.c.bf16 %v624, %v620
    %v741 = vpack.c.bf16 %v625, %v621
    %v742 = vpack.c.bf16 %v626, %v622
    %v743 = vpack.c.bf16 %v627, %v623
    %v744 = vpack.c.bf16 %v632, %v628
    %v745 = vpack.c.bf16 %v633, %v629
    %v746 = vpack.c.bf16 %v634, %v630
    %v747 = vpack.c.bf16 %v635, %v631
    %v748 = vpack.c.bf16 %v640, %v636
    %v749 = vpack.c.bf16 %v641, %v637
    %v750 = vpack.c.bf16 %v642, %v638
    %v751 = vpack.c.bf16 %v643, %v639
    %v752 = vpack.c.bf16 %v648, %v644
    %v753 = vpack.c.bf16 %v649, %v645
    %v754 = vpack.c.bf16 %v650, %v646
    %v755 = vpack.c.bf16 %v651, %v647
    %v756 = vpack.c.bf16 %v656, %v652
    %v757 = vpack.c.bf16 %v657, %v653
    %v758 = vpack.c.bf16 %v658, %v654
    %v759 = vpack.c.bf16 %v659, %v655
    %v760 = vpack.c.bf16 %v664, %v660
    %v761 = vpack.c.bf16 %v665, %v661
    %v762 = vpack.c.bf16 %v666, %v662
    %v763 = vpack.c.bf16 %v667, %v663
    %v764 = vpack.c.bf16 %v672, %v668
    %v765 = vpack.c.bf16 %v673, %v669
    %v766 = vpack.c.bf16 %v674, %v670
    %v767 = vpack.c.bf16 %v675, %v671
    %v768 = vpack.c.bf16 %v680, %v676
    %v769 = vpack.c.bf16 %v681, %v677
    %v770 = vpack.c.bf16 %v682, %v678
    %v771 = vpack.c.bf16 %v683, %v679
    %v772 = vpack.c.bf16 %v688, %v684
    %v773 = vpack.c.bf16 %v689, %v685
    %v774 = vpack.c.bf16 %v690, %v686
    %v775 = vpack.c.bf16 %v691, %v687
    %v776 = vpack.c.bf16 %v696, %v692
    %v777 = vpack.c.bf16 %v697, %v693
    %v778 = vpack.c.bf16 %v698, %v694
    %v779 = vpack.c.bf16 %v699, %v695
    %v780 = vpack.c.bf16 %v704, %v700
    %v781 = vpack.c.bf16 %v705, %v701
    %v782 = vpack.c.bf16 %v706, %v702
    %v783 = vpack.c.bf16 %v707, %v703
    %v784 = vpack.c.bf16 %v712, %v708
    %v785 = vpack.c.bf16 %v713, %v709
    %v786 = vpack.c.bf16 %v714, %v710
    %v787 = vpack.c.bf16 %v715, %v711
    %v788 = vpack.c.bf16 %v720, %v716
    %v789 = vpack.c.bf16 %v721, %v717
    %v790 = vpack.c.bf16 %v722, %v718
    %v791 = vpack.c.bf16 %v723, %v719
    %v792 = vpack.c.bf16 %v728, %v724
    %v793 = vpack.c.bf16 %v729, %v725
    %v794 = vpack.c.bf16 %v730, %v726
    %v795 = vpack.c.bf16 %v731, %v727
    %v796 = vld [vmem:[#allocation7] sm:$0x77]
    %v798 = vunpack.c.l.b16 %v796
    %v799 = vunpack.c.h.b16 %v796
    %v800 = vpack.c.b16 %v798, %v798
    %v801 = vpack.c.b16 %v799, %v799
    %804 = vmatpush.bf16.msra.mxu0 %v760
    %805 = vmatpush.bf16.msra.mxu0 %v756
    %806 = vmatpush.bf16.msra.mxu0 %v752
    %807 = vmatpush.bf16.msra.mxu0 %v748
    %808 = vmatpush.bf16.msra.mxu0 %v744
    %809 = vmatpush.bf16.msra.mxu0 %v740
    %810 = vmatpush.bf16.msra.mxu0 %v736
    %811 = vmatpush.bf16.msra.mxu0 %v732
    %812 = vmatmul.bf16.gmra.mxu0 %v800
    %v813 = vpop.f32.mrf.mxu0
    %v814 = vadd.f32 0.0, %v813
    %v815 = vpop.f32.mrf.mxu0
    %816 = vdwg.mxu0
    %817 = vmatpush.bf16.msra.mxu0 %v792
    %818 = vmatpush.bf16.msra.mxu0 %v788
    %819 = vmatpush.bf16.msra.mxu0 %v784
    %820 = vmatpush.bf16.msra.mxu0 %v780
    %821 = vmatpush.bf16.msra.mxu0 %v776
    %822 = vmatpush.bf16.msra.mxu0 %v772
    %823 = vmatpush.bf16.msra.mxu0 %v768
    %824 = vmatpush.bf16.msra.mxu0 %v764
    %825 = vmatmul.bf16.gmra.mxu0 %v801
    %v826 = vpop.f32.mrf.mxu0
    %v827 = vadd.f32 %v814, %v826
    %v828 = vpop.f32.mrf.mxu0
    %829 = vdwg.mxu0
    %830 = vmatpush.bf16.msra.mxu0 %v761
    %831 = vmatpush.bf16.msra.mxu0 %v757
    %832 = vmatpush.bf16.msra.mxu0 %v753
    %833 = vmatpush.bf16.msra.mxu0 %v749
    %834 = vmatpush.bf16.msra.mxu0 %v745
    %835 = vmatpush.bf16.msra.mxu0 %v741
    %836 = vmatpush.bf16.msra.mxu0 %v737
    %837 = vmatpush.bf16.msra.mxu0 %v733
    %838 = vmatmul.bf16.gmra.mxu0 %v800
    %v839 = vpop.f32.mrf.mxu0
    %v840 = vadd.f32 0.0, %v839
    %v841 = vpop.f32.mrf.mxu0
    %842 = vdwg.mxu0
    %843 = vmatpush.bf16.msra.mxu0 %v793
    %844 = vmatpush.bf16.msra.mxu0 %v789
    %845 = vmatpush.bf16.msra.mxu0 %v785
    %846 = vmatpush.bf16.msra.mxu0 %v781
    %847 = vmatpush.bf16.msra.mxu0 %v777
    %848 = vmatpush.bf16.msra.mxu0 %v773
    %849 = vmatpush.bf16.msra.mxu0 %v769
    %850 = vmatpush.bf16.msra.mxu0 %v765
    %851 = vmatmul.bf16.gmra.mxu0 %v801
    %v852 = vpop.f32.mrf.mxu0
    %v853 = vadd.f32 %v840, %v852
    %v854 = vpop.f32.mrf.mxu0
    %855 = vdwg.mxu0
    %856 = vmatpush.bf16.msra.mxu0 %v762
    %857 = vmatpush.bf16.msra.mxu0 %v758
    %858 = vmatpush.bf16.msra.mxu0 %v754
    %859 = vmatpush.bf16.msra.mxu0 %v750
    %860 = vmatpush.bf16.msra.mxu0 %v746
    %861 = vmatpush.bf16.msra.mxu0 %v742
    %862 = vmatpush.bf16.msra.mxu0 %v738
    %863 = vmatpush.bf16.msra.mxu0 %v734
    %864 = vmatmul.bf16.gmra.mxu0 %v800
    %v865 = vpop.f32.mrf.mxu0
    %v866 = vadd.f32 0.0, %v865
    %v867 = vpop.f32.mrf.mxu0
    %868 = vdwg.mxu0
    %869 = vmatpush.bf16.msra.mxu0 %v794
    %870 = vmatpush.bf16.msra.mxu0 %v790
    %871 = vmatpush.bf16.msra.mxu0 %v786
    %872 = vmatpush.bf16.msra.mxu0 %v782
    %873 = vmatpush.bf16.msra.mxu0 %v778
    %874 = vmatpush.bf16.msra.mxu0 %v774
    %875 = vmatpush.bf16.msra.mxu0 %v770
    %876 = vmatpush.bf16.msra.mxu0 %v766
    %877 = vmatmul.bf16.gmra.mxu0 %v801
    %v878 = vpop.f32.mrf.mxu0
    %v879 = vadd.f32 %v866, %v878
    %v880 = vpop.f32.mrf.mxu0
    %881 = vdwg.mxu0
    %882 = vmatpush.bf16.msra.mxu0 %v763
    %883 = vmatpush.bf16.msra.mxu0 %v759
    %884 = vmatpush.bf16.msra.mxu0 %v755
    %885 = vmatpush.bf16.msra.mxu0 %v751
    %886 = vmatpush.bf16.msra.mxu0 %v747
    %887 = vmatpush.bf16.msra.mxu0 %v743
    %888 = vmatpush.bf16.msra.mxu0 %v739
    %889 = vmatpush.bf16.msra.mxu0 %v735
    %890 = vmatmul.bf16.gmra.mxu0 %v800
    %v891 = vpop.f32.mrf.mxu0
    %v892 = vadd.f32 0.0, %v891
    %v893 = vpop.f32.mrf.mxu0
    %894 = vdwg.mxu0
    %895 = vmatpush.bf16.msra.mxu0 %v795
    %896 = vmatpush.bf16.msra.mxu0 %v791
    %897 = vmatpush.bf16.msra.mxu0 %v787
    %898 = vmatpush.bf16.msra.mxu0 %v783
    %899 = vmatpush.bf16.msra.mxu0 %v779
    %900 = vmatpush.bf16.msra.mxu0 %v775
    %901 = vmatpush.bf16.msra.mxu0 %v771
    %902 = vmatpush.bf16.msra.mxu0 %v767
    %903 = vmatmul.bf16.gmra.mxu0 %v801
    %v904 = vpop.f32.mrf.mxu0
    %v905 = vadd.f32 %v892, %v904
    %v906 = vpop.f32.mrf.mxu0
    %907 = vdwg.mxu0
    %v912 = vrot.slane %v827, 3
    %v913 = vrot.slane %v853, 3
    %v914 = vrot.slane %v879, 3
    %v915 = vrot.slane %v905, 3
    %v920 = vadd.f32 %v827, %v912
    %v921 = vadd.f32 %v853, %v913
    %v922 = vadd.f32 %v879, %v914
    %v923 = vadd.f32 %v905, %v915
    %v925 = vperm.slane %v211, 0
    %v926 = vperm.slane %v211, 2
    %v927 = vperm.slane %v211, 4
    %v928 = vperm.slane %v211, 6
    %v933 = vperm.slane %v925, 0
    %v934 = vperm.slane %v926, 0
    %v935 = vperm.slane %v927, 0
    %v936 = vperm.slane %v928, 0
    %v937 = vmul.f32 %v920, %v933
    %v938 = vmul.f32 %v921, %v934
    %v939 = vmul.f32 %v922, %v935
    %v940 = vmul.f32 %v923, %v936
    %v945 = vrot.slane %v938, 4
    %v946 = vrot.slane %v940, 4
    %vm947 = vcmask 1043456
    %v948 = vsel %vm947, %v937, %v945
    %v949 = vsel %vm947, %v939, %v946
    %952 = vst [vmem:[#allocation10] sm:$0x77] %v948
    %953 = vst [vmem:[#allocation10 + $0x8] sm:$0x77] %v949
    // Predicated region
    $region34: #{tpu_custom_call.1} parent=1 // pred_check
      _
    $region35: #{tpu_custom_call.1} parent=1 // pred_check_branch
      %955 = sbr.rel (0) target = $region37
    $region36: #{tpu_custom_call.1} parent=1 // pred_region
      %957 = vsyncadd [#allocation4], 0
      %s959 = sshll.u32 [#allocation10], 4
      %s960 = int_to_ptr.vmem [resolvable:$true] %s959
      %s961 = sshll.u32 %s4, 4
      %s962 = int_to_ptr.hbm [resolvable:$true] %s961
      %964 = dma.vmem_to_hbm [thread:$0]  %s960, 256, %s962, [#allocation4]
    $region37: #{tpu_custom_call.1} parent=1 // pred_fallthru
      _
    // Predicated region
    $region38: #{tpu_custom_call.1} parent=1 // pred_check
      _
    $region39: #{tpu_custom_call.1} parent=1 // pred_check_branch
      %966 = sbr.rel (0) target = $region41
    $region40: #{tpu_custom_call.1} parent=1 // pred_region
      %968 = dma.done [#allocation4], 256
    $region41: #{tpu_custom_call.1} parent=1 // pred_fallthru
      _
    %969 = vsyncpa [#allocation3], 1
    %970 = vsyncpa [#allocation6], 1
    %971 = vsyncpa [#allocation9], 1
    %972 = vsyncpa [#allocation4], 1

</llo_original>
